<compile_context>
chip_gen: v7x
topology: tpu7x:2x2x1
jax: 0.10.0
libtpu: 0.0.40
codegen_flags: <defaults>
</compile_context>

<pallas_src>
import functools

import jax
import jax.numpy as jnp
from jax import lax
from jax.experimental import pallas as pl
from jax.experimental.pallas import tpu as pltpu


# --------------------------------------------------------------------------
# Fused MHA kernel: one grid step = one batch element.
#   x block (N, E)  ->  o block (N, E)  (heads already merged, lane-dense)
# --------------------------------------------------------------------------
def _mha_fused_kernel(x_ref, wqkv_ref, bqkv_ref, wproj_ref, bproj_ref, o_ref,
                      qkv_scr, heads_scr, ctx_scr, *, num_heads, head_dim,
                      scale):
    n, e = o_ref.shape
    d = head_dim
    H = num_heads

    # ---- 1) fused qkv projection on the MXU (bf16 operands, f32 accumulate).
    xb = x_ref[...].astype(jnp.bfloat16)
    qkv = jnp.dot(xb, wqkv_ref[...], preferred_element_type=jnp.float32)
    qkv = qkv + bqkv_ref[...]                                  # (N, 3E) f32

    # ---- 2) de-interleave into a head-major bf16 scratch.
    # Static lane offsets only (trace-time loop); the per-head reads inside
    # the fori_loop below then index ONLY the leading (untiled) dimension.
    for c in range(3):
        for h in range(H):
            lo = c * e + h * d
            qkv_scr[c * H + h] = qkv[:, lo:lo + d].astype(jnp.bfloat16)

    # ---- 3) per-head attention.  fori_loop bounds live ranges (one (N,N)
    # energy tile live at a time); dynamic index is on the leading dim only.
    def head_body(h, carry):
        q = qkv_scr[h]                                         # (N, D) bf16
        k = qkv_scr[H + h]                                     # (N, D) bf16
        v = qkv_scr[2 * H + h]                                 # (N, D) bf16

        # energy = q @ k^T without materializing a transpose.
        energy = lax.dot_general(
            q, k,
            dimension_numbers=(((1,), (1,)), ((), ())),
            preferred_element_type=jnp.float32)                # (N, N) f32

        # Numerically-stable softmax in f32; the module's post-softmax
        # 1/sqrt(E) scale is folded into the denominator.
        m = jnp.max(energy, axis=-1, keepdims=True)
        p = jnp.exp(energy - m)
        denom = jnp.sum(p, axis=-1, keepdims=True) * scale
        att = p * pl.reciprocal(denom, approx=False)

        head_out = jnp.dot(att.astype(jnp.bfloat16), v,
                           preferred_element_type=jnp.float32)  # (N, D) f32
        heads_scr[h] = head_out.astype(jnp.bfloat16)            # per-head store
        return carry

    lax.fori_loop(0, H, head_body, 0)

    # ---- 4) merge heads (static lane offsets) + fused output projection.
    for h in range(H):
        ctx_scr[:, h * d:(h + 1) * d] = heads_scr[h]
    out = jnp.dot(ctx_scr[...], wproj_ref[...],
                  preferred_element_type=jnp.float32)           # (N, E) f32
    o_ref[...] = (out + bproj_ref[...]).astype(o_ref.dtype)


# --------------------------------------------------------------------------
# One-time parameter prep (hoisted out of the forward pass):
#   * permute qkv weight/bias columns so the projection output is contiguous
#     q | k | v with heads contiguous (kills all activation transposes),
#   * cast matmul weights to bf16 (fast MXU path, half the HBM traffic);
#     biases stay f32 (added to the f32 accumulator).
# PyTorch qkv output column j = h*(3*D) + d*3 + c  ->  j' = c*E + h*D + d.
# --------------------------------------------------------------------------
def prepare_params(params, num_heads):
    E = params["w_qkv"].shape[0]
    H = num_heads
    D = E // H
    w_qkv = jnp.transpose(
        params["w_qkv"].reshape(E, H, D, 3), (0, 3, 1, 2)).reshape(E, 3 * E)
    b_qkv = jnp.transpose(
        params["b_qkv"].reshape(H, D, 3), (2, 0, 1)).reshape(1, 3 * E)
    return {
        "w_qkv": w_qkv.astype(jnp.bfloat16),
        "b_qkv": b_qkv.astype(jnp.float32),
        "w_proj": params["w_proj"].astype(jnp.bfloat16),
        "b_proj": params["b_proj"].reshape(1, E).astype(jnp.float32),
    }


# --------------------------------------------------------------------------
# Full MultiHeadAttention forward (single fused pallas_call).
# --------------------------------------------------------------------------
def multi_head_attention(x, prepped, num_heads):
    B, N, E = x.shape
    H = num_heads
    D = E // H
    scale = float(E) ** 0.5

    kern = functools.partial(_mha_fused_kernel, num_heads=H, head_dim=D,
                             scale=scale)
    return pl.pallas_call(
        kern,
        out_shape=jax.ShapeDtypeStruct((B, N, E), x.dtype),
        grid=(B,),
        in_specs=[
            pl.BlockSpec((None, N, E), lambda b: (b, 0, 0)),     # x (per batch)
            pl.BlockSpec((E, 3 * E), lambda b: (0, 0)),          # W_qkv resident
            pl.BlockSpec((1, 3 * E), lambda b: (0, 0)),          # b_qkv resident
            pl.BlockSpec((E, E), lambda b: (0, 0)),              # W_proj resident
            pl.BlockSpec((1, E), lambda b: (0, 0)),              # b_proj resident
        ],
        out_specs=pl.BlockSpec((None, N, E), lambda b: (b, 0, 0)),
        scratch_shapes=[
            pltpu.VMEM((3 * H, N, D), jnp.bfloat16),   # head-major q|k|v
            pltpu.VMEM((H, N, D), jnp.bfloat16),       # per-head attention out
            pltpu.VMEM((N, E), jnp.bfloat16),          # merged-head context
        ],
        compiler_params=pltpu.CompilerParams(
            dimension_semantics=("parallel",)),
    )(x, prepped["w_qkv"], prepped["b_qkv"], prepped["w_proj"],
      prepped["b_proj"])


# --------------------------------------------------------------------------
# Pure-JAX f32 reference (mirrors the PyTorch forward) for a correctness check.
# --------------------------------------------------------------------------
def reference_mha(x, params, num_heads):
    B, N, E = x.shape
    H = num_heads
    D = E // H
    qkv = x @ params["w_qkv"] + params["b_qkv"]
    qkv = qkv.reshape(B, N, H, D, 3)
    q = jnp.transpose(qkv[..., 0], (0, 2, 1, 3))
    k = jnp.transpose(qkv[..., 1], (0, 2, 1, 3))
    v = jnp.transpose(qkv[..., 2], (0, 2, 1, 3))
    energy = jnp.einsum("bhqd,bhkd->bhqk", q, k)
    att = jax.nn.softmax(energy, axis=-1) / (E ** 0.5)
    out = jnp.einsum("bhal,bhlv->bhav", att, v)
    out = jnp.transpose(out, (0, 2, 1, 3)).reshape(B, N, E)
    return out @ params["w_proj"] + params["b_proj"]


if __name__ == "__main__":
    # Small shapes consistent with the module: emb_size=32, num_heads=4 -> D=8.
    B, N, E, H = 2, 8, 32, 4

    key = jax.random.PRNGKey(0)
    kx, kw1, kb1, kw2, kb2 = jax.random.split(key, 5)

    x = jax.random.normal(kx, (B, N, E), dtype=jnp.float32)

    # nn.Linear weight (out, in) stored here as (in, out).
    params = {
        "w_qkv": jax.random.normal(kw1, (E, 3 * E), dtype=jnp.float32) * 0.02,
        "b_qkv": jax.random.normal(kb1, (3 * E,), dtype=jnp.float32) * 0.02,
        "w_proj": jax.random.normal(kw2, (E, E), dtype=jnp.float32) * 0.02,
        "b_proj": jax.random.normal(kb2, (E,), dtype=jnp.float32) * 0.02,
    }

    prepped = prepare_params(params, H)            # one-time weight prep
    out = multi_head_attention(x, prepped, num_heads=H)
    out = jax.block_until_ready(out)

    ref = reference_mha(x, params, num_heads=H)
    assert out.shape == (B, N, E)
    # bf16 MXU operands -> relaxed tolerance vs. the f32 reference.
    assert jnp.allclose(out, ref, atol=2e-2, rtol=2e-2), "mismatch vs reference"

    print("KERNEL_OK")
</pallas_src>

<mosaic_0001>
module attributes {stable_mosaic.version = 11 : i64} {
  func.func @_mha_fused_kernel(%arg0: i32, %arg1: memref<1x8x32xf32, #tpu.memory_space<vmem>>, %arg2: memref<32x96xbf16, #tpu.memory_space<vmem>>, %arg3: memref<1x96xf32, #tpu.memory_space<vmem>>, %arg4: memref<32x32xbf16, #tpu.memory_space<vmem>>, %arg5: memref<1x32xf32, #tpu.memory_space<vmem>>, %arg6: memref<1x8x32xf32, #tpu.memory_space<vmem>>, %arg7: memref<12x8x8xbf16, #tpu.memory_space<vmem>>, %arg8: memref<4x8x8xbf16, #tpu.memory_space<vmem>>, %arg9: memref<8x32xbf16, #tpu.memory_space<vmem>>) attributes {dimension_semantics = [#tpu.dimension_semantics<parallel>], iteration_bounds = array<i64: 2>, scalar_prefetch = 0 : i64, scratch_operands = 3 : i64, tpu.core_type = #tpu.core_type<tc>, window_params = [{transform_indices = @transform_0, window_bounds = array<i64: 1, 8, 32>}, {pipeline_mode = #tpu.pipeline_mode<synchronous>, transform_indices = @transform_1, window_bounds = array<i64: 32, 96>}, {pipeline_mode = #tpu.pipeline_mode<synchronous>, transform_indices = @transform_2, window_bounds = array<i64: 1, 96>}, {pipeline_mode = #tpu.pipeline_mode<synchronous>, transform_indices = @transform_3, window_bounds = array<i64: 32, 32>}, {pipeline_mode = #tpu.pipeline_mode<synchronous>, transform_indices = @transform_4, window_bounds = array<i64: 1, 32>}, {transform_indices = @transform_5, window_bounds = array<i64: 1, 8, 32>}]} {
    %c0 = arith.constant 0 : index
    %c0_0 = arith.constant 0 : index
    %c0_1 = arith.constant 0 : index
    %0 = vector.load %arg1[%c0, %c0_0, %c0_1] : memref<1x8x32xf32, #tpu.memory_space<vmem>>, vector<1x8x32xf32>
    %1 = vector.shape_cast %0 : vector<1x8x32xf32> to vector<8x32xf32>
    %2 = arith.truncf %1 : vector<8x32xf32> to vector<8x32xbf16>
    %c0_2 = arith.constant 0 : index
    %c0_3 = arith.constant 0 : index
    %3 = vector.load %arg2[%c0_2, %c0_3] : memref<32x96xbf16, #tpu.memory_space<vmem>>, vector<32x96xbf16>
    %cst = arith.constant dense<0.000000e+00> : vector<8x96xf32>
    %4 = tpu.matmul %2, %3, %cst {dimension_numbers = #tpu.dot_dimension_numbers<[1], [0], [0], [1], [0, 0, 1, 1], [], []>} : vector<8x32xbf16>, vector<32x96xbf16>, vector<8x96xf32> -> vector<8x96xf32>
    %c0_4 = arith.constant 0 : index
    %c0_5 = arith.constant 0 : index
    %5 = vector.load %arg3[%c0_4, %c0_5] : memref<1x96xf32, #tpu.memory_space<vmem>>, vector<1x96xf32>
    %6 = vector.broadcast %5 : vector<1x96xf32> to vector<8x96xf32>
    %7 = arith.addf %4, %6 : vector<8x96xf32>
    %8 = vector.extract_strided_slice %7 {offsets = [0, 0], sizes = [8, 8], strides = [1, 1]} : vector<8x96xf32> to vector<8x8xf32>
    %9 = arith.truncf %8 : vector<8x8xf32> to vector<8x8xbf16>
    %c0_6 = arith.constant 0 : index
    %c0_7 = arith.constant 0 : index
    %c0_8 = arith.constant 0 : index
    %10 = vector.load %arg7[%c0_6, %c0_7, %c0_8] : memref<12x8x8xbf16, #tpu.memory_space<vmem>>, vector<1x8x8xbf16>
    %11 = vector.shape_cast %10 : vector<1x8x8xbf16> to vector<8x8xbf16>
    %12 = vector.shape_cast %9 : vector<8x8xbf16> to vector<1x8x8xbf16>
    tpu.vector_store %arg7[%c0_6, %c0_7, %c0_8], %12 {strides = array<i32>} : memref<12x8x8xbf16, #tpu.memory_space<vmem>>, vector<1x8x8xbf16>,
    %13 = vector.extract_strided_slice %7 {offsets = [0, 8], sizes = [8, 8], strides = [1, 1]} : vector<8x96xf32> to vector<8x8xf32>
    %14 = arith.truncf %13 : vector<8x8xf32> to vector<8x8xbf16>
    %c1 = arith.constant 1 : index
    %c0_9 = arith.constant 0 : index
    %c0_10 = arith.constant 0 : index
    %15 = vector.load %arg7[%c1, %c0_9, %c0_10] : memref<12x8x8xbf16, #tpu.memory_space<vmem>>, vector<1x8x8xbf16>
    %16 = vector.shape_cast %15 : vector<1x8x8xbf16> to vector<8x8xbf16>
    %17 = vector.shape_cast %14 : vector<8x8xbf16> to vector<1x8x8xbf16>
    tpu.vector_store %arg7[%c1, %c0_9, %c0_10], %17 {strides = array<i32>} : memref<12x8x8xbf16, #tpu.memory_space<vmem>>, vector<1x8x8xbf16>,
    %18 = vector.extract_strided_slice %7 {offsets = [0, 16], sizes = [8, 8], strides = [1, 1]} : vector<8x96xf32> to vector<8x8xf32>
    %19 = arith.truncf %18 : vector<8x8xf32> to vector<8x8xbf16>
    %c2 = arith.constant 2 : index
    %c0_11 = arith.constant 0 : index
    %c0_12 = arith.constant 0 : index
    %20 = vector.load %arg7[%c2, %c0_11, %c0_12] : memref<12x8x8xbf16, #tpu.memory_space<vmem>>, vector<1x8x8xbf16>
    %21 = vector.shape_cast %20 : vector<1x8x8xbf16> to vector<8x8xbf16>
    %22 = vector.shape_cast %19 : vector<8x8xbf16> to vector<1x8x8xbf16>
    tpu.vector_store %arg7[%c2, %c0_11, %c0_12], %22 {strides = array<i32>} : memref<12x8x8xbf16, #tpu.memory_space<vmem>>, vector<1x8x8xbf16>,
    %23 = vector.extract_strided_slice %7 {offsets = [0, 24], sizes = [8, 8], strides = [1, 1]} : vector<8x96xf32> to vector<8x8xf32>
    %24 = arith.truncf %23 : vector<8x8xf32> to vector<8x8xbf16>
    %c3 = arith.constant 3 : index
    %c0_13 = arith.constant 0 : index
    %c0_14 = arith.constant 0 : index
    %25 = vector.load %arg7[%c3, %c0_13, %c0_14] : memref<12x8x8xbf16, #tpu.memory_space<vmem>>, vector<1x8x8xbf16>
    %26 = vector.shape_cast %25 : vector<1x8x8xbf16> to vector<8x8xbf16>
    %27 = vector.shape_cast %24 : vector<8x8xbf16> to vector<1x8x8xbf16>
    tpu.vector_store %arg7[%c3, %c0_13, %c0_14], %27 {strides = array<i32>} : memref<12x8x8xbf16, #tpu.memory_space<vmem>>, vector<1x8x8xbf16>,
    %28 = vector.extract_strided_slice %7 {offsets = [0, 32], sizes = [8, 8], strides = [1, 1]} : vector<8x96xf32> to vector<8x8xf32>
    %29 = arith.truncf %28 : vector<8x8xf32> to vector<8x8xbf16>
    %c4 = arith.constant 4 : index
    %c0_15 = arith.constant 0 : index
    %c0_16 = arith.constant 0 : index
    %30 = vector.load %arg7[%c4, %c0_15, %c0_16] : memref<12x8x8xbf16, #tpu.memory_space<vmem>>, vector<1x8x8xbf16>
    %31 = vector.shape_cast %30 : vector<1x8x8xbf16> to vector<8x8xbf16>
    %32 = vector.shape_cast %29 : vector<8x8xbf16> to vector<1x8x8xbf16>
    tpu.vector_store %arg7[%c4, %c0_15, %c0_16], %32 {strides = array<i32>} : memref<12x8x8xbf16, #tpu.memory_space<vmem>>, vector<1x8x8xbf16>,
    %33 = vector.extract_strided_slice %7 {offsets = [0, 40], sizes = [8, 8], strides = [1, 1]} : vector<8x96xf32> to vector<8x8xf32>
    %34 = arith.truncf %33 : vector<8x8xf32> to vector<8x8xbf16>
    %c5 = arith.constant 5 : index
    %c0_17 = arith.constant 0 : index
    %c0_18 = arith.constant 0 : index
    %35 = vector.load %arg7[%c5, %c0_17, %c0_18] : memref<12x8x8xbf16, #tpu.memory_space<vmem>>, vector<1x8x8xbf16>
    %36 = vector.shape_cast %35 : vector<1x8x8xbf16> to vector<8x8xbf16>
    %37 = vector.shape_cast %34 : vector<8x8xbf16> to vector<1x8x8xbf16>
    tpu.vector_store %arg7[%c5, %c0_17, %c0_18], %37 {strides = array<i32>} : memref<12x8x8xbf16, #tpu.memory_space<vmem>>, vector<1x8x8xbf16>,
    %38 = vector.extract_strided_slice %7 {offsets = [0, 48], sizes = [8, 8], strides = [1, 1]} : vector<8x96xf32> to vector<8x8xf32>
    %39 = arith.truncf %38 : vector<8x8xf32> to vector<8x8xbf16>
    %c6 = arith.constant 6 : index
    %c0_19 = arith.constant 0 : index
    %c0_20 = arith.constant 0 : index
    %40 = vector.load %arg7[%c6, %c0_19, %c0_20] : memref<12x8x8xbf16, #tpu.memory_space<vmem>>, vector<1x8x8xbf16>
    %41 = vector.shape_cast %40 : vector<1x8x8xbf16> to vector<8x8xbf16>
    %42 = vector.shape_cast %39 : vector<8x8xbf16> to vector<1x8x8xbf16>
    tpu.vector_store %arg7[%c6, %c0_19, %c0_20], %42 {strides = array<i32>} : memref<12x8x8xbf16, #tpu.memory_space<vmem>>, vector<1x8x8xbf16>,
    %43 = vector.extract_strided_slice %7 {offsets = [0, 56], sizes = [8, 8], strides = [1, 1]} : vector<8x96xf32> to vector<8x8xf32>
    %44 = arith.truncf %43 : vector<8x8xf32> to vector<8x8xbf16>
    %c7 = arith.constant 7 : index
    %c0_21 = arith.constant 0 : index
    %c0_22 = arith.constant 0 : index
    %45 = vector.load %arg7[%c7, %c0_21, %c0_22] : memref<12x8x8xbf16, #tpu.memory_space<vmem>>, vector<1x8x8xbf16>
    %46 = vector.shape_cast %45 : vector<1x8x8xbf16> to vector<8x8xbf16>
    %47 = vector.shape_cast %44 : vector<8x8xbf16> to vector<1x8x8xbf16>
    tpu.vector_store %arg7[%c7, %c0_21, %c0_22], %47 {strides = array<i32>} : memref<12x8x8xbf16, #tpu.memory_space<vmem>>, vector<1x8x8xbf16>,
    %48 = vector.extract_strided_slice %7 {offsets = [0, 64], sizes = [8, 8], strides = [1, 1]} : vector<8x96xf32> to vector<8x8xf32>
    %49 = arith.truncf %48 : vector<8x8xf32> to vector<8x8xbf16>
    %c8 = arith.constant 8 : index
    %c0_23 = arith.constant 0 : index
    %c0_24 = arith.constant 0 : index
    %50 = vector.load %arg7[%c8, %c0_23, %c0_24] : memref<12x8x8xbf16, #tpu.memory_space<vmem>>, vector<1x8x8xbf16>
    %51 = vector.shape_cast %50 : vector<1x8x8xbf16> to vector<8x8xbf16>
    %52 = vector.shape_cast %49 : vector<8x8xbf16> to vector<1x8x8xbf16>
    tpu.vector_store %arg7[%c8, %c0_23, %c0_24], %52 {strides = array<i32>} : memref<12x8x8xbf16, #tpu.memory_space<vmem>>, vector<1x8x8xbf16>,
    %53 = vector.extract_strided_slice %7 {offsets = [0, 72], sizes = [8, 8], strides = [1, 1]} : vector<8x96xf32> to vector<8x8xf32>
    %54 = arith.truncf %53 : vector<8x8xf32> to vector<8x8xbf16>
    %c9 = arith.constant 9 : index
    %c0_25 = arith.constant 0 : index
    %c0_26 = arith.constant 0 : index
    %55 = vector.load %arg7[%c9, %c0_25, %c0_26] : memref<12x8x8xbf16, #tpu.memory_space<vmem>>, vector<1x8x8xbf16>
    %56 = vector.shape_cast %55 : vector<1x8x8xbf16> to vector<8x8xbf16>
    %57 = vector.shape_cast %54 : vector<8x8xbf16> to vector<1x8x8xbf16>
    tpu.vector_store %arg7[%c9, %c0_25, %c0_26], %57 {strides = array<i32>} : memref<12x8x8xbf16, #tpu.memory_space<vmem>>, vector<1x8x8xbf16>,
    %58 = vector.extract_strided_slice %7 {offsets = [0, 80], sizes = [8, 8], strides = [1, 1]} : vector<8x96xf32> to vector<8x8xf32>
    %59 = arith.truncf %58 : vector<8x8xf32> to vector<8x8xbf16>
    %c10 = arith.constant 10 : index
    %c0_27 = arith.constant 0 : index
    %c0_28 = arith.constant 0 : index
    %60 = vector.load %arg7[%c10, %c0_27, %c0_28] : memref<12x8x8xbf16, #tpu.memory_space<vmem>>, vector<1x8x8xbf16>
    %61 = vector.shape_cast %60 : vector<1x8x8xbf16> to vector<8x8xbf16>
    %62 = vector.shape_cast %59 : vector<8x8xbf16> to vector<1x8x8xbf16>
    tpu.vector_store %arg7[%c10, %c0_27, %c0_28], %62 {strides = array<i32>} : memref<12x8x8xbf16, #tpu.memory_space<vmem>>, vector<1x8x8xbf16>,
    %63 = vector.extract_strided_slice %7 {offsets = [0, 88], sizes = [8, 8], strides = [1, 1]} : vector<8x96xf32> to vector<8x8xf32>
    %64 = arith.truncf %63 : vector<8x8xf32> to vector<8x8xbf16>
    %c11 = arith.constant 11 : index
    %c0_29 = arith.constant 0 : index
    %c0_30 = arith.constant 0 : index
    %65 = vector.load %arg7[%c11, %c0_29, %c0_30] : memref<12x8x8xbf16, #tpu.memory_space<vmem>>, vector<1x8x8xbf16>
    %66 = vector.shape_cast %65 : vector<1x8x8xbf16> to vector<8x8xbf16>
    %67 = vector.shape_cast %64 : vector<8x8xbf16> to vector<1x8x8xbf16>
    tpu.vector_store %arg7[%c11, %c0_29, %c0_30], %67 {strides = array<i32>} : memref<12x8x8xbf16, #tpu.memory_space<vmem>>, vector<1x8x8xbf16>,
    %c0_i32 = arith.constant 0 : i32
    %c4_i32 = arith.constant 4 : i32
    %68 = arith.addi %c0_i32, %c4_i32 : i32
    %c1_i32 = arith.constant 1 : i32
    scf.for %arg10 = %c0_i32 to %68 step %c1_i32  : i32 {
      %90 = arith.index_cast %arg10 : i32 to index
      %c0_60 = arith.constant 0 : index
      %c0_61 = arith.constant 0 : index
      %91 = vector.load %arg7[%90, %c0_60, %c0_61] : memref<12x8x8xbf16, #tpu.memory_space<vmem>>, vector<1x8x8xbf16>
      %92 = vector.shape_cast %91 : vector<1x8x8xbf16> to vector<8x8xbf16>
      %c4_i32_62 = arith.constant 4 : i32
      %93 = arith.addi %c4_i32_62, %arg10 : i32
      %94 = arith.index_cast %93 : i32 to index
      %c0_63 = arith.constant 0 : index
      %c0_64 = arith.constant 0 : index
      %95 = vector.load %arg7[%94, %c0_63, %c0_64] : memref<12x8x8xbf16, #tpu.memory_space<vmem>>, vector<1x8x8xbf16>
      %96 = vector.shape_cast %95 : vector<1x8x8xbf16> to vector<8x8xbf16>
      %c8_i32 = arith.constant 8 : i32
      %97 = arith.addi %c8_i32, %arg10 : i32
      %98 = arith.index_cast %97 : i32 to index
      %c0_65 = arith.constant 0 : index
      %c0_66 = arith.constant 0 : index
      %99 = vector.load %arg7[%98, %c0_65, %c0_66] : memref<12x8x8xbf16, #tpu.memory_space<vmem>>, vector<1x8x8xbf16>
      %100 = vector.shape_cast %99 : vector<1x8x8xbf16> to vector<8x8xbf16>
      %cst_67 = arith.constant dense<0.000000e+00> : vector<8x8xf32>
      %101 = tpu.matmul %92, %96, %cst_67 {dimension_numbers = #tpu.dot_dimension_numbers<[1], [1], [0], [0], [0, 0, 1, 0], [], []>} : vector<8x8xbf16>, vector<8x8xbf16>, vector<8x8xf32> -> vector<8x8xf32>
      %cst_68 = arith.constant dense<0xFF800000> : vector<8xf32>
      %102 = vector.multi_reduction <maximumf>, %101, %cst_68 [1] : vector<8x8xf32> to vector<8xf32>
      %103 = vector.shape_cast %102 : vector<8xf32> to vector<8x1xf32>
      %104 = vector.broadcast %103 : vector<8x1xf32> to vector<8x8xf32>
      %105 = arith.subf %101, %104 : vector<8x8xf32>
      %106 = math.exp %105 : vector<8x8xf32>
      %cst_69 = arith.constant dense<0.000000e+00> : vector<8xf32>
      %107 = vector.multi_reduction <add>, %106, %cst_69 [1] : vector<8x8xf32> to vector<8xf32>
      %108 = vector.shape_cast %107 : vector<8xf32> to vector<8x1xf32>
      %cst_70 = arith.constant 5.65685415 : f32
      %109 = vector.broadcast %cst_70 : f32 to vector<8x1xf32>
      %110 = arith.mulf %108, %109 : vector<8x1xf32>
      %111 = tpu.reciprocal %110 : vector<8x1xf32> -> vector<8x1xf32>
      %112 = vector.broadcast %111 : vector<8x1xf32> to vector<8x8xf32>
      %113 = arith.mulf %106, %112 : vector<8x8xf32>
      %114 = arith.truncf %113 : vector<8x8xf32> to vector<8x8xbf16>
      %cst_71 = arith.constant dense<0.000000e+00> : vector<8x8xf32>
      %115 = tpu.matmul %114, %100, %cst_71 {dimension_numbers = #tpu.dot_dimension_numbers<[1], [0], [0], [1], [0, 0, 1, 1], [], []>} : vector<8x8xbf16>, vector<8x8xbf16>, vector<8x8xf32> -> vector<8x8xf32>
      %116 = arith.truncf %115 : vector<8x8xf32> to vector<8x8xbf16>
      %117 = arith.index_cast %arg10 : i32 to index
      %c0_72 = arith.constant 0 : index
      %c0_73 = arith.constant 0 : index
      %118 = vector.load %arg8[%117, %c0_72, %c0_73] : memref<4x8x8xbf16, #tpu.memory_space<vmem>>, vector<1x8x8xbf16>
      %119 = vector.shape_cast %118 : vector<1x8x8xbf16> to vector<8x8xbf16>
      %120 = vector.shape_cast %116 : vector<8x8xbf16> to vector<1x8x8xbf16>
      tpu.vector_store %arg8[%117, %c0_72, %c0_73], %120 {strides = array<i32>} : memref<4x8x8xbf16, #tpu.memory_space<vmem>>, vector<1x8x8xbf16>,
    }
    %c4_i32_31 = arith.constant 4 : i32
    %c0_32 = arith.constant 0 : index
    %c0_33 = arith.constant 0 : index
    %c0_34 = arith.constant 0 : index
    %69 = vector.load %arg8[%c0_32, %c0_33, %c0_34] : memref<4x8x8xbf16, #tpu.memory_space<vmem>>, vector<1x8x8xbf16>
    %70 = vector.shape_cast %69 : vector<1x8x8xbf16> to vector<8x8xbf16>
    %c0_35 = arith.constant 0 : index
    %c0_36 = arith.constant 0 : index
    %71 = vector.load %arg9[%c0_35, %c0_36] : memref<8x32xbf16, #tpu.memory_space<vmem>>, vector<8x8xbf16>
    tpu.vector_store %arg9[%c0_35, %c0_36], %70 {strides = array<i32>} : memref<8x32xbf16, #tpu.memory_space<vmem>>, vector<8x8xbf16>,
    %c1_37 = arith.constant 1 : index
    %c0_38 = arith.constant 0 : index
    %c0_39 = arith.constant 0 : index
    %72 = vector.load %arg8[%c1_37, %c0_38, %c0_39] : memref<4x8x8xbf16, #tpu.memory_space<vmem>>, vector<1x8x8xbf16>
    %73 = vector.shape_cast %72 : vector<1x8x8xbf16> to vector<8x8xbf16>
    %c0_40 = arith.constant 0 : index
    %c8_41 = arith.constant 8 : index
    %74 = vector.load %arg9[%c0_40, %c8_41] : memref<8x32xbf16, #tpu.memory_space<vmem>>, vector<8x8xbf16>
    tpu.vector_store %arg9[%c0_40, %c8_41], %73 {strides = array<i32>} : memref<8x32xbf16, #tpu.memory_space<vmem>>, vector<8x8xbf16>,
    %c2_42 = arith.constant 2 : index
    %c0_43 = arith.constant 0 : index
    %c0_44 = arith.constant 0 : index
    %75 = vector.load %arg8[%c2_42, %c0_43, %c0_44] : memref<4x8x8xbf16, #tpu.memory_space<vmem>>, vector<1x8x8xbf16>
    %76 = vector.shape_cast %75 : vector<1x8x8xbf16> to vector<8x8xbf16>
    %c0_45 = arith.constant 0 : index
    %c16 = arith.constant 16 : index
    %77 = vector.load %arg9[%c0_45, %c16] : memref<8x32xbf16, #tpu.memory_space<vmem>>, vector<8x8xbf16>
    tpu.vector_store %arg9[%c0_45, %c16], %76 {strides = array<i32>} : memref<8x32xbf16, #tpu.memory_space<vmem>>, vector<8x8xbf16>,
    %c3_46 = arith.constant 3 : index
    %c0_47 = arith.constant 0 : index
    %c0_48 = arith.constant 0 : index
    %78 = vector.load %arg8[%c3_46, %c0_47, %c0_48] : memref<4x8x8xbf16, #tpu.memory_space<vmem>>, vector<1x8x8xbf16>
    %79 = vector.shape_cast %78 : vector<1x8x8xbf16> to vector<8x8xbf16>
    %c0_49 = arith.constant 0 : index
    %c24 = arith.constant 24 : index
    %80 = vector.load %arg9[%c0_49, %c24] : memref<8x32xbf16, #tpu.memory_space<vmem>>, vector<8x8xbf16>
    tpu.vector_store %arg9[%c0_49, %c24], %79 {strides = array<i32>} : memref<8x32xbf16, #tpu.memory_space<vmem>>, vector<8x8xbf16>,
    %c0_50 = arith.constant 0 : index
    %c0_51 = arith.constant 0 : index
    %81 = vector.load %arg9[%c0_50, %c0_51] : memref<8x32xbf16, #tpu.memory_space<vmem>>, vector<8x32xbf16>
    %c0_52 = arith.constant 0 : index
    %c0_53 = arith.constant 0 : index
    %82 = vector.load %arg4[%c0_52, %c0_53] : memref<32x32xbf16, #tpu.memory_space<vmem>>, vector<32x32xbf16>
    %cst_54 = arith.constant dense<0.000000e+00> : vector<8x32xf32>
    %83 = tpu.matmul %81, %82, %cst_54 {dimension_numbers = #tpu.dot_dimension_numbers<[1], [0], [0], [1], [0, 0, 1, 1], [], []>} : vector<8x32xbf16>, vector<32x32xbf16>, vector<8x32xf32> -> vector<8x32xf32>
    %c0_55 = arith.constant 0 : index
    %c0_56 = arith.constant 0 : index
    %84 = vector.load %arg5[%c0_55, %c0_56] : memref<1x32xf32, #tpu.memory_space<vmem>>, vector<1x32xf32>
    %85 = vector.broadcast %84 : vector<1x32xf32> to vector<8x32xf32>
    %86 = arith.addf %83, %85 : vector<8x32xf32>
    %c0_57 = arith.constant 0 : index
    %c0_58 = arith.constant 0 : index
    %c0_59 = arith.constant 0 : index
    %87 = vector.load %arg6[%c0_57, %c0_58, %c0_59] : memref<1x8x32xf32, #tpu.memory_space<vmem>>, vector<1x8x32xf32>
    %88 = vector.shape_cast %87 : vector<1x8x32xf32> to vector<8x32xf32>
    %89 = vector.shape_cast %86 : vector<8x32xf32> to vector<1x8x32xf32>
    tpu.vector_store %arg6[%c0_57, %c0_58, %c0_59], %89 {strides = array<i32>} : memref<1x8x32xf32, #tpu.memory_space<vmem>>, vector<1x8x32xf32>,
    return
  }
  func.func @transform_0(%arg0: i32) -> (i32, i32, i32) {
    %c0_i32 = arith.constant 0 : i32
    %c0_i32_0 = arith.constant 0 : i32
    %c0_i32_1 = arith.constant 0 : i32
    return %arg0, %c0_i32, %c0_i32_0 : i32, i32, i32
  }
  func.func @transform_1(%arg0: i32) -> (i32, i32) {
    %c0_i32 = arith.constant 0 : i32
    %c0_i32_0 = arith.constant 0 : i32
    %c0_i32_1 = arith.constant 0 : i32
    return %c0_i32, %c0_i32_0 : i32, i32
  }
  func.func @transform_2(%arg0: i32) -> (i32, i32) {
    %c0_i32 = arith.constant 0 : i32
    %c0_i32_0 = arith.constant 0 : i32
    %c0_i32_1 = arith.constant 0 : i32
    return %c0_i32, %c0_i32_0 : i32, i32
  }
  func.func @transform_3(%arg0: i32) -> (i32, i32) {
    %c0_i32 = arith.constant 0 : i32
    %c0_i32_0 = arith.constant 0 : i32
    %c0_i32_1 = arith.constant 0 : i32
    return %c0_i32, %c0_i32_0 : i32, i32
  }
  func.func @transform_4(%arg0: i32) -> (i32, i32) {
    %c0_i32 = arith.constant 0 : i32
    %c0_i32_0 = arith.constant 0 : i32
    %c0_i32_1 = arith.constant 0 : i32
    return %c0_i32, %c0_i32_0 : i32, i32
  }
  func.func @transform_5(%arg0: i32) -> (i32, i32, i32) {
    %c0_i32 = arith.constant 0 : i32
    %c0_i32_0 = arith.constant 0 : i32
    %c0_i32_1 = arith.constant 0 : i32
    return %arg0, %c0_i32, %c0_i32_0 : i32, i32, i32
  }
}

</mosaic_0001>

<llo_original>
// kernel: tpu_custom_call.1
$region0: #{tpu_custom_call.1}
  #allocation0 [shape = 'u32[]', space=smem, size = 0x4, offset = 0x4, fixed_abs, tag = 'smem constant byte address 0x4 - core index']
  #allocation1 [shape = 'u32[144,128]{1,0:T(1,128)}', space=vmem, size = 0x12000, scoped, tag = 'internal scratch']
  #allocation2 [shape = 'bf16[12,8,8]{2,1,0:T(8,128)(2,1)}', space=vmem, size = 0x6000, scoped, tag = 'scratch operand']
  #allocation3 [shape = 'bf16[4,8,8]{2,1,0:T(8,128)(2,1)}', space=vmem, size = 0x2000, scoped, tag = 'scratch operand']
  #allocation4 [shape = 'bf16[8,32]{1,0:T(8,128)(2,1)}', space=vmem, size = 0x800, scoped, tag = 'scratch operand']
  %s0 = inlined_call_operand.hbm [shape: f32[2,8,32], index: 0, kind: input, shape index: {}]
  %s1 = inlined_call_operand.hbm [shape: bf16[32,96], index: 1, kind: input, shape index: {}]
  %s2 = inlined_call_operand.vmem [shape: f32[1,96], index: 2, kind: input, shape index: {}]
  %s3 = inlined_call_operand.hbm [shape: bf16[32,32], index: 3, kind: input, shape index: {}]
  %s4 = inlined_call_operand.vmem [shape: f32[1,32], index: 4, kind: input, shape index: {}]
  %s5 = inlined_call_operand.hbm [shape: f32[2,8,32], index: 5, kind: output, shape index: {}]
  %s6 = sld [smem:[#allocation0]]
  $region72: #{tpu_custom_call.1} parent=0
    _
  %s8 = ssub.s32 1, %s6
  %s9 = scalar_select 0, %s8, %s6
  $region1: #{tpu_custom_call.1} parent=0
    #allocation5 [shape = 'u8[8192]{0}', space=vmem, size = 0x2000, scoped, tag = 'input window, operand 0']
    #allocation6 [shape = 's32[2]{0}', space=sflag, size = 0x8, scoped, tag = 'scoped memory for tpu_custom_call.1']
    #allocation7 [shape = 's32[2]{0}', space=sflag, size = 0x8, scoped, tag = 'scoped memory for tpu_custom_call.1']
    #allocation8 [shape = 'u8[8192]{0}', space=vmem, size = 0x2000, scoped, tag = 'input window, operand 1, single buffered']
    #allocation9 [shape = 's32[1]{0}', space=sflag, size = 0x4, scoped, tag = 'scoped memory for tpu_custom_call.1']
    #allocation10 [shape = 'u8[8192]{0}', space=vmem, size = 0x2000, scoped, tag = 'input window, operand 3, single buffered']
    #allocation11 [shape = 'u8[8192]{0}', space=vmem, size = 0x2000, scoped, tag = 'output window, operand 0']
    %10 = vsyncpa [#allocation6], 0
    %s11 = scalar_lea.sflag [#allocation6], 1
    %12 = vsyncpa %s11, 0
    %13 = vsyncpa [#allocation9], 0
    %14 = vsyncpa [#allocation7], 0
    %s15 = scalar_lea.sflag [#allocation7], 1
    %16 = vsyncpa %s15, 0
    loop: start=0, step=1, limit=4
    $region2: #{tpu_custom_call.1} parent=1 // loop_pre_header
      _
    $region3: #{tpu_custom_call.1} parent=1 // loop_header
      %s18 = sphi 0, %s22
      %p19 = scmp.ge.s32.totalorder %s18, 4
      %s28 = sphi 0, %s30
      %s31 = sphi 0, %s28
      %s32 = sphi 0, %s31
      %s48 = sphi 0, %s32
      %s52 = sphi 0, %s52
      %s54 = sphi 0, %s52
      %s55 = sphi 0, %s54
      %s69 = sphi 0, %s55
      %s73 = sphi 0, %s73
      %s75 = sphi 0, %s73
      %s76 = sphi 0, %s75
      %s90 = sphi 0, %s76
      %s94 = sphi 0, %s94
      %s96 = sphi 0, %s94
      %s97 = sphi 0, %s96
      %s111 = sphi 0, %s97
      %s115 = sphi 0, %s115
      %s117 = sphi 0, %s115
      %s118 = sphi 0, %s117
      %s132 = sphi 0, %s118
      %s138 = sphi 0, %s140
      %s141 = sphi 0, %s138
      %s142 = sphi 0, %s141
      %s158 = sphi 0, %s142
    $region4: #{tpu_custom_call.1} parent=1 // loop_header_branch
      %21 = sbr.rel (%p19) target = $region8
    $region5: #{tpu_custom_call.1} parent=1 // loop_body
      %s23 = ssub.s32 %s18, 1
      %s24 = ssub.s32 %s18, 2
      %s25 = sadd.s32 %s18, 1
      %s26 = ssub.s32 %s18, %s25
      %p27 = scmp.eq.s32.totalorder %s26, 0
      %s29 = sadd.s32 %s28, 1
      %s30 = scalar_select %p27, %s28, %s29
      %p33 = pneg %p27
      %p34 = scmp.eq.s32.totalorder %s18, 1
      %p35 = por %p33, %p34
      %p36 = scmp.ne.s32.totalorder %s28, %s31
      %p37 = scmp.eq.s32.totalorder %s18, 0
      %p38 = por %p36, %p37
      %p39 = scmp.ne.s32.totalorder %s28, %s31
      %p40 = scmp.eq.s32.totalorder %s23, 1
      %p41 = por %p39, %p40
      %p42 = scmp.ne.s32.totalorder %s31, %s32
      %p43 = scmp.eq.s32.totalorder %s23, 0
      %p44 = por %p42, %p43
      %p45 = scmp.ne.s32.totalorder %s31, %s32
      %p46 = scmp.eq.s32.totalorder %s24, 1
      %p47 = por %p45, %p46
      %p49 = scmp.ne.s32.totalorder %s32, %s48
      %p50 = scmp.eq.s32.totalorder %s24, 0
      %p51 = por %p49, %p50
      %s53 = sadd.s32 %s52, 1
      %p56 = scmp.eq.s32.totalorder %s18, 1
      %p57 = scmp.ne.s32.totalorder %s52, %s54
      %p58 = scmp.eq.s32.totalorder %s18, 0
      %p59 = por %p57, %p58
      %p60 = scmp.ne.s32.totalorder %s52, %s54
      %p61 = scmp.eq.s32.totalorder %s23, 1
      %p62 = por %p60, %p61
      %p63 = scmp.ne.s32.totalorder %s54, %s55
      %p64 = scmp.eq.s32.totalorder %s23, 0
      %p65 = por %p63, %p64
      %p66 = scmp.ne.s32.totalorder %s54, %s55
      %p67 = scmp.eq.s32.totalorder %s24, 1
      %p68 = por %p66, %p67
      %p70 = scmp.ne.s32.totalorder %s55, %s69
      %p71 = scmp.eq.s32.totalorder %s24, 0
      %p72 = por %p70, %p71
      %s74 = sadd.s32 %s73, 1
      %p77 = scmp.eq.s32.totalorder %s18, 1
      %p78 = scmp.ne.s32.totalorder %s73, %s75
      %p79 = scmp.eq.s32.totalorder %s18, 0
      %p80 = por %p78, %p79
      %p81 = scmp.ne.s32.totalorder %s73, %s75
      %p82 = scmp.eq.s32.totalorder %s23, 1
      %p83 = por %p81, %p82
      %p84 = scmp.ne.s32.totalorder %s75, %s76
      %p85 = scmp.eq.s32.totalorder %s23, 0
      %p86 = por %p84, %p85
      %p87 = scmp.ne.s32.totalorder %s75, %s76
      %p88 = scmp.eq.s32.totalorder %s24, 1
      %p89 = por %p87, %p88
      %p91 = scmp.ne.s32.totalorder %s76, %s90
      %p92 = scmp.eq.s32.totalorder %s24, 0
      %p93 = por %p91, %p92
      %s95 = sadd.s32 %s94, 1
      %p98 = scmp.eq.s32.totalorder %s18, 1
      %p99 = scmp.ne.s32.totalorder %s94, %s96
      %p100 = scmp.eq.s32.totalorder %s18, 0
      %p101 = por %p99, %p100
      %p102 = scmp.ne.s32.totalorder %s94, %s96
      %p103 = scmp.eq.s32.totalorder %s23, 1
      %p104 = por %p102, %p103
      %p105 = scmp.ne.s32.totalorder %s96, %s97
      %p106 = scmp.eq.s32.totalorder %s23, 0
      %p107 = por %p105, %p106
      %p108 = scmp.ne.s32.totalorder %s96, %s97
      %p109 = scmp.eq.s32.totalorder %s24, 1
      %p110 = por %p108, %p109
      %p112 = scmp.ne.s32.totalorder %s97, %s111
      %p113 = scmp.eq.s32.totalorder %s24, 0
      %p114 = por %p112, %p113
      %s116 = sadd.s32 %s115, 1
      %p119 = scmp.eq.s32.totalorder %s18, 1
      %p120 = scmp.ne.s32.totalorder %s115, %s117
      %p121 = scmp.eq.s32.totalorder %s18, 0
      %p122 = por %p120, %p121
      %p123 = scmp.ne.s32.totalorder %s115, %s117
      %p124 = scmp.eq.s32.totalorder %s23, 1
      %p125 = por %p123, %p124
      %p126 = scmp.ne.s32.totalorder %s117, %s118
      %p127 = scmp.eq.s32.totalorder %s23, 0
      %p128 = por %p126, %p127
      %p129 = scmp.ne.s32.totalorder %s117, %s118
      %p130 = scmp.eq.s32.totalorder %s24, 1
      %p131 = por %p129, %p130
      %p133 = scmp.ne.s32.totalorder %s118, %s132
      %p134 = scmp.eq.s32.totalorder %s24, 0
      %p135 = por %p133, %p134
      %s136 = ssub.s32 %s18, %s25
      %p137 = scmp.eq.s32.totalorder %s136, 0
      %s139 = sadd.s32 %s138, 1
      %s140 = scalar_select %p137, %s138, %s139
      %p143 = pneg %p137
      %p144 = scmp.eq.s32.totalorder %s18, 1
      %p145 = por %p143, %p144
      %p146 = scmp.ne.s32.totalorder %s138, %s141
      %p147 = scmp.eq.s32.totalorder %s18, 0
      %p148 = por %p146, %p147
      %p149 = scmp.ne.s32.totalorder %s138, %s141
      %p150 = scmp.eq.s32.totalorder %s23, 1
      %p151 = por %p149, %p150
      %p152 = scmp.ne.s32.totalorder %s141, %s142
      %p153 = scmp.eq.s32.totalorder %s23, 0
      %p154 = por %p152, %p153
      %p155 = scmp.ne.s32.totalorder %s141, %s142
      %p156 = scmp.eq.s32.totalorder %s24, 1
      %p157 = por %p155, %p156
      %p159 = scmp.ne.s32.totalorder %s142, %s158
      %p160 = scmp.eq.s32.totalorder %s24, 0
      %p161 = por %p159, %p160
      %p162 = scmp.le.s32.totalorder 1, %s18
      %p163 = scmp.lt.s32.totalorder %s18, 3
      %p164 = pnand %p162, %p163
      %p165 = pneg %p164
      // Predicated region
      $region9: #{tpu_custom_call.1} parent=5 // pred_check
        _
      $region10: #{tpu_custom_call.1} parent=5 // pred_check_branch
        %167 = sbr.rel (%p164) target = $region12
      $region11: #{tpu_custom_call.1} parent=5 // pred_region
        %s168 = ssub.s32 %s18, 1
        // Predicated region
        $region13: #{tpu_custom_call.1} parent=11 // pred_check
          %p169 = pneg %p65
        $region14: #{tpu_custom_call.1} parent=11 // pred_check_branch
          %171 = sbr.rel (%p169) target = $region16
        $region15: #{tpu_custom_call.1} parent=11 // pred_region
          %s173 = ssub.s32 256, 256
          %174 = vsyncadd [#allocation9], %s173
          %s175 = sshll.u32 [#allocation8], 4
          %s176 = int_to_ptr.vmem [resolvable:$true] %s175
          %181 = dma.hbm_to_vmem [thread:$0]  %s1, 256, %s176, [#allocation9], 64, 64, 4
        $region16: #{tpu_custom_call.1} parent=11 // pred_fallthru
          _
        // Predicated region
        $region17: #{tpu_custom_call.1} parent=11 // pred_check
          %p182 = pneg %p86
        $region18: #{tpu_custom_call.1} parent=11 // pred_check_branch
          %184 = sbr.rel (%p182) target = $region20
        $region19: #{tpu_custom_call.1} parent=11 // pred_region
          _
        $region20: #{tpu_custom_call.1} parent=11 // pred_fallthru
          _
        // Predicated region
        $region21: #{tpu_custom_call.1} parent=11 // pred_check
          %p185 = pneg %p107
        $region22: #{tpu_custom_call.1} parent=11 // pred_check_branch
          %187 = sbr.rel (%p185) target = $region24
        $region23: #{tpu_custom_call.1} parent=11 // pred_region
          %s189 = ssub.s32 256, 256
          %190 = vsyncadd [#allocation9], %s189
          %s191 = sshll.u32 [#allocation10], 4
          %s192 = int_to_ptr.vmem [resolvable:$true] %s191
          %197 = dma.hbm_to_vmem [thread:$0]  %s3, 256, %s192, [#allocation9], 64, 64, 4
        $region24: #{tpu_custom_call.1} parent=11 // pred_fallthru
          _
        // Predicated region
        $region25: #{tpu_custom_call.1} parent=11 // pred_check
          %p198 = pneg %p128
        $region26: #{tpu_custom_call.1} parent=11 // pred_check_branch
          %200 = sbr.rel (%p198) target = $region28
        $region27: #{tpu_custom_call.1} parent=11 // pred_region
          _
        $region28: #{tpu_custom_call.1} parent=11 // pred_fallthru
          _
      $region12: #{tpu_custom_call.1} parent=5 // pred_fallthru
        _
      %p201 = scmp.lt.s32.totalorder %s18, 2
      // Predicated region
      $region29: #{tpu_custom_call.1} parent=5 // pred_check
        %p202 = pneg %p201
      $region30: #{tpu_custom_call.1} parent=5 // pred_check_branch
        %204 = sbr.rel (%p202) target = $region32
      $region31: #{tpu_custom_call.1} parent=5 // pred_region
        // Predicated region
        $region33: #{tpu_custom_call.1} parent=31 // pred_check
          %p205 = pneg %p38
        $region34: #{tpu_custom_call.1} parent=31 // pred_check_branch
          %207 = sbr.rel (%p205) target = $region36
        $region35: #{tpu_custom_call.1} parent=31 // pred_region
          %s208 = sand.u32 %s28, 1
          %s209 = scalar_lea.sflag [#allocation6], %s208
          %s210 = sand.u32 %s28, 1
          %s211 = smul.addr %s210, 8
          %s212 = scalar_lea.vmem [#allocation5], %s211
          %s214 = ssub.s32 128, 128
          %215 = vsyncadd %s209, %s214
          %s216 = smul.addr %s18, 128
          %s217 = scalar_lea.hbm %s0, %s216
          %s219 = sshll.u32 %s212, 4
          %s220 = int_to_ptr.vmem [resolvable:$true] %s219
          %222 = dma.hbm_to_vmem [thread:$0]  %s217, 128, %s220, %s209
        $region36: #{tpu_custom_call.1} parent=31 // pred_fallthru
          _
      $region32: #{tpu_custom_call.1} parent=5 // pred_fallthru
        _
      %p223 = scmp.le.s32.totalorder 1, %s18
      %p224 = scmp.lt.s32.totalorder %s18, 3
      %p225 = pnand %p223, %p224
      %p226 = pneg %p225
      // Predicated region
      $region37: #{tpu_custom_call.1} parent=5 // pred_check
        _
      $region38: #{tpu_custom_call.1} parent=5 // pred_check_branch
        %228 = sbr.rel (%p225) target = $region40
      $region39: #{tpu_custom_call.1} parent=5 // pred_region
        %s229 = ssub.s32 %s18, 1
        %s230 = sand.u32 %s31, 1
        %s231 = scalar_lea.sflag [#allocation6], %s230
        %s232 = sand.u32 %s31, 1
        %s233 = smul.addr %s232, 8
        %s234 = scalar_lea.vmem [#allocation5], %s233
        // Predicated region
        $region41: #{tpu_custom_call.1} parent=39 // pred_check
          %p235 = pneg %p44
        $region42: #{tpu_custom_call.1} parent=39 // pred_check_branch
          %237 = sbr.rel (%p235) target = $region44
        $region43: #{tpu_custom_call.1} parent=39 // pred_region
          %238 = dma.done %s231, 128
        $region44: #{tpu_custom_call.1} parent=39 // pred_fallthru
          _
        // Predicated region
        $region45: #{tpu_custom_call.1} parent=39 // pred_check
          %p239 = pneg %p65
        $region46: #{tpu_custom_call.1} parent=39 // pred_check_branch
          %241 = sbr.rel (%p239) target = $region48
        $region47: #{tpu_custom_call.1} parent=39 // pred_region
          %242 = dma.done [#allocation9], 256
        $region48: #{tpu_custom_call.1} parent=39 // pred_fallthru
          _
        // Predicated region
        $region49: #{tpu_custom_call.1} parent=39 // pred_check
          %p243 = pneg %p107
        $region50: #{tpu_custom_call.1} parent=39 // pred_check_branch
          %245 = sbr.rel (%p243) target = $region52
        $region51: #{tpu_custom_call.1} parent=39 // pred_region
          %246 = dma.done [#allocation9], 256
        $region52: #{tpu_custom_call.1} parent=39 // pred_fallthru
          _
        %s247 = sand.u32 %s31, 1
        %s248 = scalar_lea.sflag [#allocation6], %s247
        %s249 = sand.u32 %s31, 1
        %s250 = smul.addr %s249, 8
        %s251 = scalar_lea.vmem [#allocation5], %s250
        %p252 = pneg %p44
        %p253 = pneg %p41
        %p254 = pneg %p65
        %p255 = pneg %p62
        %p256 = pneg %p86
        %p257 = pneg %p83
        %p258 = pneg %p107
        %p259 = pneg %p104
        %p260 = pneg %p128
        %p261 = pneg %p125
        %p262 = pneg %p154
        %p263 = pneg %p151
        %s264 = sand.u32 %s141, 1
        %s265 = scalar_lea.sflag [#allocation7], %s264
        %s266 = sand.u32 %s141, 1
        %s267 = smul.addr %s266, 8
        %s268 = scalar_lea.vmem [#allocation11], %s267
        %v270 = vld [vmem:[%s234] sm:$0xff]
        %v271 = vpack.c.bf16 %v270, %v270
        %v272 = vld [vmem:[#allocation8] sm:$0xf]
        %v273 = vld [vmem:[#allocation8 + $0x4] sm:$0xf]
        %v274 = vld [vmem:[#allocation8 + $0x8] sm:$0xf]
        %v275 = vld [vmem:[#allocation8 + $0xc] sm:$0xf]
        %v276 = vld [vmem:[%s2] sm:$0x1]
        %v278 = vlaneseq
        %v279 = vshrl.u32 %v278, 7
        %v280 = vsub.s32 0, %v279
        %v281 = vrot.slane %v276, %v280
        %v287 = vunpack.c.l.b16 %v272
        %v288 = vunpack.c.l.b16 %v273
        %v289 = vunpack.c.l.b16 %v274
        %v290 = vunpack.c.l.b16 %v275
        %v291 = vpack.c.b16 %v288, %v287
        %v292 = vpack.c.b16 %v290, %v289
        %vm295 = vcmask 261120
        %v297 = vsel %vm295, %v271, 0
        %299 = vmatprep.subr.bf16.mxu0 0
        %300 = vmatpush1.bf16.msra.mxu0 %v291
        %301 = vmatprep.subr.bf16.mxu0 0
        %302 = vmatpush1.bf16.msra.mxu0 %v292
        %303 = vmatprep.subr.bf16.mxu0 0
        %304 = vmatpush1.bf16.msra.mxu0 0
        %305 = vmatprep.subr.bf16.mxu0 0
        %306 = vmatpush1.bf16.msra.mxu0 0
        %307 = vmatprep.subr.bf16.mxu0 0
        %308 = vmatpush1.bf16.msra.mxu0 0
        %309 = vmatprep.subr.bf16.mxu0 0
        %310 = vmatpush1.bf16.msra.mxu0 0
        %311 = vmatprep.subr.bf16.mxu0 0
        %312 = vmatpush1.bf16.msra.mxu0 0
        %313 = vmatprep.subr.bf16.mxu0 0
        %314 = vmatpush1.bf16.msra.mxu0 0
        %315 = vmatprep.subr.bf16.mxu0 0
        %316 = vmatpush1.bf16.msra.mxu0 0
        %317 = vmatprep.subr.bf16.mxu0 0
        %318 = vmatpush1.bf16.msra.mxu0 0
        %319 = vmatprep.subr.bf16.mxu0 0
        %320 = vmatpush1.bf16.msra.mxu0 0
        %321 = vmatprep.subr.bf16.mxu0 0
        %322 = vmatpush1.bf16.msra.mxu0 0
        %323 = vmatprep.subr.bf16.mxu0 0
        %324 = vmatpush1.bf16.msra.mxu0 0
        %325 = vmatprep.subr.bf16.mxu0 0
        %326 = vmatpush1.bf16.msra.mxu0 0
        %327 = vmatprep.subr.bf16.mxu0 0
        %328 = vmatpush1.bf16.msra.mxu0 0
        %329 = vmatprep.subr.bf16.mxu0 0
        %330 = vmatpush1.bf16.msra.mxu0 0
        %331 = vmatprep.mubr.bf16.mxu0 0
        %332 = vmatmul.mubr.bf16.gmra.mrb[0].mxu0 %v297
        %v333 = vpop.f32.mrb[0].mxu0
        %v334 = vadd.f32 %v281, %v333
        %v335 = vpop.f32.mrb[0].mxu0
        %v336 = vpop.f32.mrb[0].mxu0
        %v337 = vpop.f32.mrb[0].mxu0
        %338 = vdwg.mxu0
        %v339 = vpack.c.bf16 %v334, %v334
        %vm340 = vcmask 60416
        %341 = vst.msk [vmem:[#allocation2] sm:$0xf] %vm340, %v339
        %v343 = vunpack.c.l.b16 %v339
        %v344 = vpack.c.b16 %v343, %v343
        %345 = vrot.lane.b32.xlu0 %v344, 120
        %v346 = vpop.permute.xlu0 %345
        %s348 = scalar_lea.vmem [#allocation2], 4
        %349 = vst.msk [vmem:[%s348] sm:$0xf] %vm340, %v346
        %350 = vrot.lane.b32.xlu0 %v344, 112
        %v351 = vpop.permute.xlu0 %350
        %s353 = scalar_lea.vmem [#allocation2], 8
        %354 = vst.msk [vmem:[%s353] sm:$0xf] %vm340, %v351
        %355 = vrot.lane.b32.xlu0 %v344, 104
        %v356 = vpop.permute.xlu0 %355
        %s358 = scalar_lea.vmem [#allocation2], 12
        %359 = vst.msk [vmem:[%s358] sm:$0xf] %vm340, %v356
        %360 = vrot.lane.b32.xlu0 %v344, 96
        %v361 = vpop.permute.xlu0 %360
        %s363 = scalar_lea.vmem [#allocation2], 16
        %364 = vst.msk [vmem:[%s363] sm:$0xf] %vm340, %v361
        %365 = vrot.lane.b32.xlu0 %v344, 88
        %v366 = vpop.permute.xlu0 %365
        %s368 = scalar_lea.vmem [#allocation2], 20
        %369 = vst.msk [vmem:[%s368] sm:$0xf] %vm340, %v366
        %370 = vrot.lane.b32.xlu0 %v344, 80
        %v371 = vpop.permute.xlu0 %370
        %s373 = scalar_lea.vmem [#allocation2], 24
        %374 = vst.msk [vmem:[%s373] sm:$0xf] %vm340, %v371
        %375 = vrot.lane.b32.xlu0 %v344, 72
        %v376 = vpop.permute.xlu0 %375
        %s378 = scalar_lea.vmem [#allocation2], 28
        %379 = vst.msk [vmem:[%s378] sm:$0xf] %vm340, %v376
        %380 = vrot.lane.b32.xlu0 %v344, 64
        %v381 = vpop.permute.xlu0 %380
        %s383 = scalar_lea.vmem [#allocation2], 32
        %384 = vst.msk [vmem:[%s383] sm:$0xf] %vm340, %v381
        %385 = vrot.lane.b32.xlu0 %v344, 56
        %v386 = vpop.permute.xlu0 %385
        %s388 = scalar_lea.vmem [#allocation2], 36
        %389 = vst.msk [vmem:[%s388] sm:$0xf] %vm340, %v386
        %390 = vrot.lane.b32.xlu0 %v344, 48
        %v391 = vpop.permute.xlu0 %390
        %s393 = scalar_lea.vmem [#allocation2], 40
        %394 = vst.msk [vmem:[%s393] sm:$0xf] %vm340, %v391
        %395 = vrot.lane.b32.xlu0 %v344, 40
        %v396 = vpop.permute.xlu0 %395
        %s398 = scalar_lea.vmem [#allocation2], 44
        %399 = vst.msk [vmem:[%s398] sm:$0xf] %vm340, %v396
        loop: start=0, step=1, limit=4
        $region53: #{tpu_custom_call.1} parent=39 // loop_pre_header
          _
        $region54: #{tpu_custom_call.1} parent=39 // loop_header
          %s401 = sphi 0, %s405
          %p402 = scmp.ge.s32.totalorder %s401, 4
        $region55: #{tpu_custom_call.1} parent=39 // loop_header_branch
          %404 = sbr.rel (%p402) target = $region59
        $region56: #{tpu_custom_call.1} parent=39 // loop_body
          %s406 = smul.addr %s401, 4
          %s407 = scalar_lea.vmem [#allocation2], %s406
          %v408 = vld [vmem:[%s407] sm:$0xf]
          %s409 = sadd.s32 %s401, 4
          %s410 = smul.addr %s409, 4
          %s411 = scalar_lea.vmem [#allocation2], %s410
          %v412 = vld [vmem:[%s411] sm:$0xf]
          %s413 = sadd.s32 %s401, 8
          %s414 = smul.addr %s413, 4
          %s415 = scalar_lea.vmem [#allocation2], %s414
          %v416 = vld [vmem:[%s415] sm:$0xf]
          %vm417 = vcmask 64512
          %v419 = vsel %vm417, %v408, 0
          %v422 = vsel %vm417, %v412, 0
          %424 = vmatprep.subr.bf16.mxu0 0
          %425 = vmatpush1.bf16.xpose.msra.mxu0 %v422
          %426 = vmatprep.subr.bf16.mxu0 0
          %427 = vmatpush1.bf16.xpose.msra.mxu0 0
          %428 = vmatprep.subr.bf16.mxu0 0
          %429 = vmatpush1.bf16.xpose.msra.mxu0 0
          %430 = vmatprep.subr.bf16.mxu0 0
          %431 = vmatpush1.bf16.xpose.msra.mxu0 0
          %432 = vmatprep.subr.bf16.mxu0 0
          %433 = vmatpush1.bf16.xpose.msra.mxu0 0
          %434 = vmatprep.subr.bf16.mxu0 0
          %435 = vmatpush1.bf16.xpose.msra.mxu0 0
          %436 = vmatprep.subr.bf16.mxu0 0
          %437 = vmatpush1.bf16.xpose.msra.mxu0 0
          %438 = vmatprep.subr.bf16.mxu0 0
          %439 = vmatpush1.bf16.xpose.msra.mxu0 0
          %440 = vmatprep.subr.bf16.mxu0 0
          %441 = vmatpush1.bf16.xpose.msra.mxu0 0
          %442 = vmatprep.subr.bf16.mxu0 0
          %443 = vmatpush1.bf16.xpose.msra.mxu0 0
          %444 = vmatprep.subr.bf16.mxu0 0
          %445 = vmatpush1.bf16.xpose.msra.mxu0 0
          %446 = vmatprep.subr.bf16.mxu0 0
          %447 = vmatpush1.bf16.xpose.msra.mxu0 0
          %448 = vmatprep.subr.bf16.mxu0 0
          %449 = vmatpush1.bf16.xpose.msra.mxu0 0
          %450 = vmatprep.subr.bf16.mxu0 0
          %451 = vmatpush1.bf16.xpose.msra.mxu0 0
          %452 = vmatprep.subr.bf16.mxu0 0
          %453 = vmatpush1.bf16.xpose.msra.mxu0 0
          %454 = vmatprep.subr.bf16.mxu0 0
          %455 = vmatpush1.bf16.xpose.msra.mxu0 0
          %456 = vmatprep.mubr.bf16.mxu0 0
          %457 = vmatmul.mubr.bf16.gmra.mrb[0].mxu0 %v419
          %v458 = vpop.f32.mrb[0].mxu0
          %v459 = vadd.f32 0.0, %v458
          %v460 = vpop.f32.mrb[0].mxu0
          %v461 = vpop.f32.mrb[0].mxu0
          %v462 = vpop.f32.mrb[0].mxu0
          %463 = vdwg.mxu0
          %v464 = vsel %vm417, %v459, -inf
          %465 = vmax.xlane.f32.xlu0 %v464
          %v466 = vpop.xlane.xlu0 %465
          %v467 = vsub.f32 %v459, %v466
          %v468 = vmul.f32 %v467, 1.442695
          %v469 = vpow.pop %v468
          %v470 = vsel %vm417, %v469, 0.0
          %471 = vadd.xlane.f32.xlu0 %v470
          %v472 = vpop.xlane.xlu0 %471
          %v473 = vmul.f32 %v472, 5.656854
          %v474 = vrcp.pop %v473
          %v475 = vmul.f32 %v469, %v474
          %v476 = vpack.c.bf16 %v475, %v475
          %v478 = vsel %vm417, %v476, 0
          %vm480 = vcmask 1043456
          %v482 = vsel %vm480, %v416, 0
          %484 = vmatprep.subr.bf16.mxu0 0
          %485 = vmatpush1.bf16.msra.mxu0 %v482
          %486 = vmatprep.subr.bf16.mxu0 0
          %487 = vmatpush1.bf16.msra.mxu0 0
          %488 = vmatprep.subr.bf16.mxu0 0
          %489 = vmatpush1.bf16.msra.mxu0 0
          %490 = vmatprep.subr.bf16.mxu0 0
          %491 = vmatpush1.bf16.msra.mxu0 0
          %492 = vmatprep.subr.bf16.mxu0 0
          %493 = vmatpush1.bf16.msra.mxu0 0
          %494 = vmatprep.subr.bf16.mxu0 0
          %495 = vmatpush1.bf16.msra.mxu0 0
          %496 = vmatprep.subr.bf16.mxu0 0
          %497 = vmatpush1.bf16.msra.mxu0 0
          %498 = vmatprep.subr.bf16.mxu0 0
          %499 = vmatpush1.bf16.msra.mxu0 0
          %500 = vmatprep.subr.bf16.mxu0 0
          %501 = vmatpush1.bf16.msra.mxu0 0
          %502 = vmatprep.subr.bf16.mxu0 0
          %503 = vmatpush1.bf16.msra.mxu0 0
          %504 = vmatprep.subr.bf16.mxu0 0
          %505 = vmatpush1.bf16.msra.mxu0 0
          %506 = vmatprep.subr.bf16.mxu0 0
          %507 = vmatpush1.bf16.msra.mxu0 0
          %508 = vmatprep.subr.bf16.mxu0 0
          %509 = vmatpush1.bf16.msra.mxu0 0
          %510 = vmatprep.subr.bf16.mxu0 0
          %511 = vmatpush1.bf16.msra.mxu0 0
          %512 = vmatprep.subr.bf16.mxu0 0
          %513 = vmatpush1.bf16.msra.mxu0 0
          %514 = vmatprep.subr.bf16.mxu0 0
          %515 = vmatpush1.bf16.msra.mxu0 0
          %516 = vmatprep.mubr.bf16.mxu0 0
          %517 = vmatmul.mubr.bf16.gmra.mrb[0].mxu0 %v478
          %v518 = vpop.f32.mrb[0].mxu0
          %v519 = vadd.f32 0.0, %v518
          %v520 = vpop.f32.mrb[0].mxu0
          %v521 = vpop.f32.mrb[0].mxu0
          %v522 = vpop.f32.mrb[0].mxu0
          %523 = vdwg.mxu0
          %v524 = vpack.c.bf16 %v519, %v519
          %s525 = smul.addr %s401, 4
          %s526 = scalar_lea.vmem [#allocation3], %s525
          %527 = vst.msk [vmem:[%s526] sm:$0xf] %vm340, %v524
        $region57: #{tpu_custom_call.1} parent=39 // loop_footer
          %s405 = sadd.s32 1, %s401
        $region58: #{tpu_custom_call.1} parent=39 // loop_footer_branch
          %400 = sbr.rel target = $region54
        $region59: #{tpu_custom_call.1} parent=39 // loop_exit
          _
        %v528 = vld [vmem:[#allocation3] sm:$0xf]
        %529 = vst.msk [vmem:[#allocation4] sm:$0xf] %vm340, %v528
        %s530 = scalar_lea.vmem [#allocation3], 4
        %v531 = vld [vmem:[%s530] sm:$0xf]
        %533 = vrot.lane.b32.xlu0 %v531, 8
        %v534 = vpop.permute.xlu0 %533
        %vm536 = vcmask 126016
        %537 = vst.msk [vmem:[#allocation4] sm:$0xf] %vm536, %v534
        %s538 = scalar_lea.vmem [#allocation3], 8
        %v539 = vld [vmem:[%s538] sm:$0xf]
        %541 = vrot.lane.b32.xlu0 %v539, 16
        %v542 = vpop.permute.xlu0 %541
        %vm544 = vcmask 191616
        %545 = vst.msk [vmem:[#allocation4] sm:$0xf] %vm544, %v542
        %s546 = scalar_lea.vmem [#allocation3], 12
        %v547 = vld [vmem:[%s546] sm:$0xf]
        %549 = vrot.lane.b32.xlu0 %v547, 24
        %v550 = vpop.permute.xlu0 %549
        %vm552 = vcmask 257216
        %553 = vst.msk [vmem:[#allocation4] sm:$0xf] %vm552, %v550
        %v554 = vld [vmem:[#allocation4] sm:$0xf]
        %v555 = vld [vmem:[#allocation10] sm:$0xf]
        %v556 = vld [vmem:[#allocation10 + $0x4] sm:$0xf]
        %v557 = vld [vmem:[#allocation10 + $0x8] sm:$0xf]
        %v558 = vld [vmem:[#allocation10 + $0xc] sm:$0xf]
        %v559 = vld [vmem:[%s4] sm:$0x1]
        %v561 = vlaneseq
        %v562 = vshrl.u32 %v561, 7
        %v563 = vsub.s32 0, %v562
        %v564 = vrot.slane %v559, %v563
        %v570 = vunpack.c.l.b16 %v555
        %v571 = vunpack.c.l.b16 %v556
        %v572 = vunpack.c.l.b16 %v557
        %v573 = vunpack.c.l.b16 %v558
        %v574 = vpack.c.b16 %v571, %v570
        %v575 = vpack.c.b16 %v573, %v572
        %v579 = vsel %vm295, %v554, 0
        %581 = vmatprep.subr.bf16.mxu0 0
        %582 = vmatpush1.bf16.msra.mxu0 %v574
        %583 = vmatprep.subr.bf16.mxu0 0
        %584 = vmatpush1.bf16.msra.mxu0 %v575
        %585 = vmatprep.subr.bf16.mxu0 0
        %586 = vmatpush1.bf16.msra.mxu0 0
        %587 = vmatprep.subr.bf16.mxu0 0
        %588 = vmatpush1.bf16.msra.mxu0 0
        %589 = vmatprep.subr.bf16.mxu0 0
        %590 = vmatpush1.bf16.msra.mxu0 0
        %591 = vmatprep.subr.bf16.mxu0 0
        %592 = vmatpush1.bf16.msra.mxu0 0
        %593 = vmatprep.subr.bf16.mxu0 0
        %594 = vmatpush1.bf16.msra.mxu0 0
        %595 = vmatprep.subr.bf16.mxu0 0
        %596 = vmatpush1.bf16.msra.mxu0 0
        %597 = vmatprep.subr.bf16.mxu0 0
        %598 = vmatpush1.bf16.msra.mxu0 0
        %599 = vmatprep.subr.bf16.mxu0 0
        %600 = vmatpush1.bf16.msra.mxu0 0
        %601 = vmatprep.subr.bf16.mxu0 0
        %602 = vmatpush1.bf16.msra.mxu0 0
        %603 = vmatprep.subr.bf16.mxu0 0
        %604 = vmatpush1.bf16.msra.mxu0 0
        %605 = vmatprep.subr.bf16.mxu0 0
        %606 = vmatpush1.bf16.msra.mxu0 0
        %607 = vmatprep.subr.bf16.mxu0 0
        %608 = vmatpush1.bf16.msra.mxu0 0
        %609 = vmatprep.subr.bf16.mxu0 0
        %610 = vmatpush1.bf16.msra.mxu0 0
        %611 = vmatprep.subr.bf16.mxu0 0
        %612 = vmatpush1.bf16.msra.mxu0 0
        %613 = vmatprep.mubr.bf16.mxu0 0
        %614 = vmatmul.mubr.bf16.gmra.mrb[0].mxu0 %v579
        %v615 = vpop.f32.mrb[0].mxu0
        %v616 = vadd.f32 %v564, %v615
        %v617 = vpop.f32.mrb[0].mxu0
        %v618 = vpop.f32.mrb[0].mxu0
        %v619 = vpop.f32.mrb[0].mxu0
        %620 = vdwg.mxu0
        %621 = vst.msk [vmem:[%s268] sm:$0xff] %vm295, %v616
        %s622 = sand.u32 %s141, 1
        %s623 = scalar_lea.sflag [#allocation7], %s622
        %s624 = sand.u32 %s141, 1
        %s625 = smul.addr %s624, 8
        %s626 = scalar_lea.vmem [#allocation11], %s625
        // Predicated region
        $region60: #{tpu_custom_call.1} parent=39 // pred_check
          %p627 = pneg %p151
        $region61: #{tpu_custom_call.1} parent=39 // pred_check_branch
          %629 = sbr.rel (%p627) target = $region63
        $region62: #{tpu_custom_call.1} parent=39 // pred_region
          %s631 = ssub.s32 128, 128
          %632 = vsyncadd %s623, %s631
          %s633 = smul.addr %s23, 128
          %s634 = scalar_lea.hbm %s5, %s633
          %s636 = sshll.u32 %s626, 4
          %s637 = int_to_ptr.vmem [resolvable:$true] %s636
          %639 = dma.vmem_to_hbm [thread:$0]  %s637, 128, %s634, %s623
        $region63: #{tpu_custom_call.1} parent=39 // pred_fallthru
          _
      $region40: #{tpu_custom_call.1} parent=5 // pred_fallthru
        _
      %p640 = scmp.le.s32.totalorder 2, %s18
      // Predicated region
      $region64: #{tpu_custom_call.1} parent=5 // pred_check
        %p641 = pneg %p640
      $region65: #{tpu_custom_call.1} parent=5 // pred_check_branch
        %643 = sbr.rel (%p641) target = $region67
      $region66: #{tpu_custom_call.1} parent=5 // pred_region
        %s644 = ssub.s32 %s18, 2
        // Predicated region
        $region68: #{tpu_custom_call.1} parent=66 // pred_check
          %p645 = pneg %p157
        $region69: #{tpu_custom_call.1} parent=66 // pred_check_branch
          %647 = sbr.rel (%p645) target = $region71
        $region70: #{tpu_custom_call.1} parent=66 // pred_region
          %s648 = sand.u32 %s142, 1
          %s649 = scalar_lea.sflag [#allocation7], %s648
          %s650 = sand.u32 %s142, 1
          %s651 = smul.addr %s650, 8
          %s652 = scalar_lea.vmem [#allocation11], %s651
          %653 = dma.done %s649, 128
        $region71: #{tpu_custom_call.1} parent=66 // pred_fallthru
          _
      $region67: #{tpu_custom_call.1} parent=5 // pred_fallthru
        _
    $region6: #{tpu_custom_call.1} parent=1 // loop_footer
      %s22 = sadd.s32 1, %s18
    $region7: #{tpu_custom_call.1} parent=1 // loop_footer_branch
      %17 = sbr.rel target = $region3
    $region8: #{tpu_custom_call.1} parent=1 // loop_exit
      _
    %654 = vsyncpa [#allocation6], 1
    %s655 = scalar_lea.sflag [#allocation6], 1
    %656 = vsyncpa %s655, 1
    %657 = vsyncpa [#allocation9], 1
    %658 = vsyncpa [#allocation7], 1
    %s659 = scalar_lea.sflag [#allocation7], 1
    %660 = vsyncpa %s659, 1

</llo_original>
